<compile_context>
chip_gen: v7x
topology: tpu7x:2x2x1
jax: 0.10.0
libtpu: 0.0.40
codegen_flags: <defaults>
</compile_context>

<pallas_src>
import functools

import numpy as np
import jax
import jax.numpy as jnp
from jax.experimental import pallas as pl
from jax.experimental.pallas import tpu as pltpu


def _pointwise_conv1d_kernel(x_ref, w_ref, b_ref, o_ref, *, compute_dtype):
    """One grid step: out[b, :, l0:l0+TL] = W @ x[b, :, l0:l0+TL] + bias."""
    x = x_ref[0].astype(compute_dtype)                  # (C_in, TL)
    w = w_ref[...]                                      # (C_out, C_in), already compute_dtype
    acc = jnp.dot(w, x, preferred_element_type=jnp.float32)   # MXU, f32 accumulate
    o_ref[0] = (acc + b_ref[...]).astype(o_ref.dtype)   # f32 bias add, lane-dense store


def _choose_length_tile(length):
    """Largest lane-dense tile (multiple of 128) that divides `length`."""
    for cand in (1024, 512, 256, 128):
        if length % cand == 0:
            return cand
    return length          # full-extent block (always legal for BlockSpec)


def pointwise_conv1d(x, weight, bias=None, *, stride=1, padding=0,
                     compute_dtype=jnp.bfloat16):
    """Pallas equivalent of PointwiseConv1d.forward (nn.Conv1d, kernel_size=1).

    x:      (B, C_in, L) float32, NCL layout (same as the nn.Module)
    weight: (C_out, C_in) or (C_out, C_in, 1)  (PyTorch Conv1d weight layout)
    bias:   (C_out,) or None
    """
    if weight.ndim == 3:
        weight = weight[:, :, 0]
    C_out, C_in_w = weight.shape
    B, C_in, L = x.shape
    assert C_in == C_in_w, (C_in, C_in_w)

    # kernel_size == 1, so stride / padding reduce to a pad + subsample on L.
    if padding:
        x = jnp.pad(x, ((0, 0), (0, 0), (padding, padding)))
    if stride != 1:
        x = x[:, :, ::stride]
    L_out = x.shape[-1]

    out_dtype = x.dtype
    w = weight.astype(compute_dtype)                    # one-off cast; halves weight DMA
    b2d = (bias if bias is not None
           else jnp.zeros((C_out,), jnp.float32)).reshape(C_out, 1).astype(jnp.float32)

    TL = _choose_length_tile(L_out)
    grid = (B, L_out // TL)

    # VMEM budget: double-buffered x / out tiles + resident weight & bias.
    bytes_x = C_in * TL * x.dtype.itemsize
    bytes_o = C_out * TL * np.dtype(out_dtype).itemsize
    bytes_w = C_out * C_in * np.dtype(compute_dtype).itemsize
    bytes_b = C_out * 4
    vmem_limit = 2 * (bytes_x + bytes_o + bytes_w + bytes_b) + (1 << 20)
    vmem_limit = int(min(max(vmem_limit, 4 << 20), 32 << 20))

    cost = pl.CostEstimate(
        flops=2 * B * L_out * C_in * C_out,
        transcendentals=0,
        bytes_accessed=(B * C_in * L_out * x.dtype.itemsize
                        + B * C_out * L_out * np.dtype(out_dtype).itemsize
                        + bytes_w + bytes_b),
    )

    return pl.pallas_call(
        functools.partial(_pointwise_conv1d_kernel, compute_dtype=compute_dtype),
        grid=grid,
        in_specs=[
            pl.BlockSpec((1, C_in, TL), lambda bi, li: (bi, 0, li)),   # activation tile
            pl.BlockSpec((C_out, C_in), lambda bi, li: (0, 0)),        # resident weight
            pl.BlockSpec((C_out, 1), lambda bi, li: (0, 0)),           # resident bias
        ],
        out_specs=pl.BlockSpec((1, C_out, TL), lambda bi, li: (bi, 0, li)),
        out_shape=jax.ShapeDtypeStruct((B, C_out, L_out), out_dtype),
        compiler_params=pltpu.CompilerParams(
            dimension_semantics=("parallel", "parallel"),
            vmem_limit_bytes=vmem_limit),
        cost_estimate=cost,
    )(x, w, b2d)


def _reference(x, weight, bias, stride=1, padding=0):
    """Pure-JAX reference (f32, highest precision)."""
    if weight.ndim == 3:
        weight = weight[:, :, 0]
    if padding:
        x = jnp.pad(x, ((0, 0), (0, 0), (padding, padding)))
    if stride != 1:
        x = x[:, :, ::stride]
    out = jnp.einsum("oi,bil->bol", weight, x,
                     precision=jax.lax.Precision.HIGHEST)
    if bias is not None:
        out = out + bias[None, :, None]
    return out


if __name__ == "__main__":
    key = jax.random.PRNGKey(0)
    kx, kw, kb, kx2, kw2, kb2 = jax.random.split(key, 6)

    # --- main case: lane-aligned shapes, bf16 MXU path -----------------------
    B, C_in, C_out, L = 2, 64, 128, 256
    x = jax.random.normal(kx, (B, C_in, L), dtype=jnp.float32)
    w = 0.05 * jax.random.normal(kw, (C_out, C_in, 1), dtype=jnp.float32)
    b = 0.05 * jax.random.normal(kb, (C_out,), dtype=jnp.float32)

    out = jax.block_until_ready(pointwise_conv1d(x, w, b))
    assert out.shape == (B, C_out, L), out.shape
    assert bool(jnp.all(jnp.isfinite(out)))
    ref = _reference(x, w, b)
    err = float(jnp.max(jnp.abs(out - ref)))
    assert err < 5e-2, f"bf16 path max |err| = {err}"

    # --- small, non-aligned case: full-extent blocks, f32 compute ------------
    B2, Ci2, Co2, L2 = 2, 4, 6, 16
    x2 = jax.random.normal(kx2, (B2, Ci2, L2), dtype=jnp.float32)
    w2 = 0.1 * jax.random.normal(kw2, (Co2, Ci2), dtype=jnp.float32)
    b2 = 0.1 * jax.random.normal(kb2, (Co2,), dtype=jnp.float32)

    out2 = jax.block_until_ready(
        pointwise_conv1d(x2, w2, b2, compute_dtype=jnp.float32))
    assert out2.shape == (B2, Co2, L2), out2.shape
    ref2 = _reference(x2, w2, b2)
    err2 = float(jnp.max(jnp.abs(out2 - ref2)))
    assert err2 < 2e-3, f"f32 path max |err| = {err2}"

    print("KERNEL_OK")
</pallas_src>

<mosaic_0001>
module attributes {stable_mosaic.version = 11 : i64} {
  func.func @_pointwise_conv1d_kernel(%arg0: i32, %arg1: i32, %arg2: memref<1x64x256xf32, #tpu.memory_space<vmem>>, %arg3: memref<128x64xbf16, #tpu.memory_space<vmem>>, %arg4: memref<128x1xf32, #tpu.memory_space<vmem>>, %arg5: memref<1x128x256xf32, #tpu.memory_space<vmem>>) attributes {dimension_semantics = [#tpu.dimension_semantics<parallel>, #tpu.dimension_semantics<parallel>], iteration_bounds = array<i64: 2, 1>, scalar_prefetch = 0 : i64, scratch_operands = 0 : i64, tpu.core_type = #tpu.core_type<tc>, window_params = [{transform_indices = @transform_0, window_bounds = array<i64: 1, 64, 256>}, {pipeline_mode = #tpu.pipeline_mode<synchronous>, transform_indices = @transform_1, window_bounds = array<i64: 128, 64>}, {pipeline_mode = #tpu.pipeline_mode<synchronous>, transform_indices = @transform_2, window_bounds = array<i64: 128, 1>}, {transform_indices = @transform_3, window_bounds = array<i64: 1, 128, 256>}]} {
    %c0 = arith.constant 0 : index
    %c0_0 = arith.constant 0 : index
    %c0_1 = arith.constant 0 : index
    %0 = vector.load %arg2[%c0, %c0_0, %c0_1] : memref<1x64x256xf32, #tpu.memory_space<vmem>>, vector<1x64x256xf32>
    %1 = vector.shape_cast %0 : vector<1x64x256xf32> to vector<64x256xf32>
    %2 = arith.truncf %1 : vector<64x256xf32> to vector<64x256xbf16>
    %c0_2 = arith.constant 0 : index
    %c0_3 = arith.constant 0 : index
    %3 = vector.load %arg3[%c0_2, %c0_3] : memref<128x64xbf16, #tpu.memory_space<vmem>>, vector<128x64xbf16>
    %cst = arith.constant dense<0.000000e+00> : vector<128x256xf32>
    %4 = tpu.matmul %3, %2, %cst {dimension_numbers = #tpu.dot_dimension_numbers<[1], [0], [0], [1], [0, 0, 1, 1], [], []>} : vector<128x64xbf16>, vector<64x256xbf16>, vector<128x256xf32> -> vector<128x256xf32>
    %c0_4 = arith.constant 0 : index
    %c0_5 = arith.constant 0 : index
    %5 = vector.load %arg4[%c0_4, %c0_5] : memref<128x1xf32, #tpu.memory_space<vmem>>, vector<128x1xf32>
    %6 = vector.broadcast %5 : vector<128x1xf32> to vector<128x256xf32>
    %7 = arith.addf %4, %6 : vector<128x256xf32>
    %c0_6 = arith.constant 0 : index
    %c0_7 = arith.constant 0 : index
    %c0_8 = arith.constant 0 : index
    %8 = vector.load %arg5[%c0_6, %c0_7, %c0_8] : memref<1x128x256xf32, #tpu.memory_space<vmem>>, vector<1x128x256xf32>
    %9 = vector.shape_cast %8 : vector<1x128x256xf32> to vector<128x256xf32>
    %10 = vector.shape_cast %7 : vector<128x256xf32> to vector<1x128x256xf32>
    tpu.vector_store %arg5[%c0_6, %c0_7, %c0_8], %10 {strides = array<i32>} : memref<1x128x256xf32, #tpu.memory_space<vmem>>, vector<1x128x256xf32>,
    return
  }
  func.func @transform_0(%arg0: i32, %arg1: i32) -> (i32, i32, i32) {
    %c0_i32 = arith.constant 0 : i32
    %c0_i32_0 = arith.constant 0 : i32
    return %arg0, %c0_i32, %arg1 : i32, i32, i32
  }
  func.func @transform_1(%arg0: i32, %arg1: i32) -> (i32, i32) {
    %c0_i32 = arith.constant 0 : i32
    %c0_i32_0 = arith.constant 0 : i32
    %c0_i32_1 = arith.constant 0 : i32
    return %c0_i32, %c0_i32_0 : i32, i32
  }
  func.func @transform_2(%arg0: i32, %arg1: i32) -> (i32, i32) {
    %c0_i32 = arith.constant 0 : i32
    %c0_i32_0 = arith.constant 0 : i32
    %c0_i32_1 = arith.constant 0 : i32
    return %c0_i32, %c0_i32_0 : i32, i32
  }
  func.func @transform_3(%arg0: i32, %arg1: i32) -> (i32, i32, i32) {
    %c0_i32 = arith.constant 0 : i32
    %c0_i32_0 = arith.constant 0 : i32
    return %arg0, %c0_i32, %arg1 : i32, i32, i32
  }
}

</mosaic_0001>

<llo_original>
// kernel: tpu_custom_call.1
$region0: #{tpu_custom_call.1}
  #allocation0 [shape = 'u32[]', space=smem, size = 0x4, offset = 0x4, fixed_abs, tag = 'smem constant byte address 0x4 - core index']
  #allocation1 [shape = 'u32[144,128]{1,0:T(1,128)}', space=vmem, size = 0x12000, scoped, tag = 'internal scratch']
  %s0 = inlined_call_operand.hbm [shape: f32[2,64,256], index: 0, kind: input, shape index: {}]
  %s1 = inlined_call_operand.vmem [shape: bf16[128,64], index: 1, kind: input, shape index: {}]
  %s2 = inlined_call_operand.vmem [shape: f32[128,1], index: 2, kind: input, shape index: {}]
  %s3 = inlined_call_operand.hbm [shape: f32[2,128,256], index: 3, kind: output, shape index: {}]
  %s4 = sld [smem:[#allocation0]]
  $region49: #{tpu_custom_call.1} parent=0
    _
  %s6 = ssub.s32 1, %s4
  %s7 = scalar_select 0, %s6, %s4
  $region1: #{tpu_custom_call.1} parent=0
    #allocation2 [shape = 'u8[131072]{0}', space=vmem, size = 0x20000, scoped, tag = 'input window, operand 0']
    #allocation3 [shape = 's32[2]{0}', space=sflag, size = 0x8, scoped, tag = 'scoped memory for tpu_custom_call.1']
    #allocation4 [shape = 's32[2]{0}', space=sflag, size = 0x8, scoped, tag = 'scoped memory for tpu_custom_call.1']
    #allocation5 [shape = 'u8[262144]{0}', space=vmem, size = 0x40000, scoped, tag = 'output window, operand 0']
    %8 = vsyncpa [#allocation3], 0
    %s9 = scalar_lea.sflag [#allocation3], 1
    %10 = vsyncpa %s9, 0
    %11 = vsyncpa [#allocation4], 0
    %s12 = scalar_lea.sflag [#allocation4], 1
    %13 = vsyncpa %s12, 0
    loop: start=0, step=1, limit=4
    $region2: #{tpu_custom_call.1} parent=1 // loop_pre_header
      _
    $region3: #{tpu_custom_call.1} parent=1 // loop_header
      %s15 = sphi 0, %s19
      %p16 = scmp.ge.s32.totalorder %s15, 4
      %s22 = sphi 0, %s34
      %s23 = sphi 0, %s30
      %s24 = sphi 0, %s22
      %s25 = sphi 0, %s23
      %s26 = sphi 0, %s24
      %s27 = sphi 0, %s25
      %s39 = sphi 0, %s41
      %s42 = sphi 0, %s39
      %s43 = sphi 0, %s42
      %s59 = sphi 0, %s43
      %s63 = sphi 0, %s63
      %s65 = sphi 0, %s63
      %s66 = sphi 0, %s65
      %s80 = sphi 0, %s66
      %s84 = sphi 0, %s84
      %s86 = sphi 0, %s84
      %s87 = sphi 0, %s86
      %s101 = sphi 0, %s87
      %s109 = sphi 0, %s111
      %s112 = sphi 0, %s109
      %s113 = sphi 0, %s112
      %s129 = sphi 0, %s113
    $region4: #{tpu_custom_call.1} parent=1 // loop_header_branch
      %18 = sbr.rel (%p16) target = $region8
    $region5: #{tpu_custom_call.1} parent=1 // loop_body
      %s20 = ssub.s32 %s15, 1
      %s21 = ssub.s32 %s15, 2
      %s28 = sadd.s32 1, %s23
      %p29 = scmp.ge.s32.totalorder %s28, 1
      %s30 = scalar_select %p29, 0, %s28
      %s31 = sadd.s32 1, %s22
      %s32 = scalar_select %p29, %s31, %s22
      %p33 = scmp.ge.s32.totalorder %s32, 2
      %s34 = scalar_select %p33, 0, %s32
      %s35 = ssub.s32 %s22, %s34
      %s36 = ssub.s32 %s23, %s30
      %s37 = sor.u32 %s35, %s36
      %p38 = scmp.eq.s32.totalorder %s37, 0
      %s40 = sadd.s32 %s39, 1
      %s41 = scalar_select %p38, %s39, %s40
      %p44 = pneg %p38
      %p45 = scmp.eq.s32.totalorder %s15, 1
      %p46 = por %p44, %p45
      %p47 = scmp.ne.s32.totalorder %s39, %s42
      %p48 = scmp.eq.s32.totalorder %s15, 0
      %p49 = por %p47, %p48
      %p50 = scmp.ne.s32.totalorder %s39, %s42
      %p51 = scmp.eq.s32.totalorder %s20, 1
      %p52 = por %p50, %p51
      %p53 = scmp.ne.s32.totalorder %s42, %s43
      %p54 = scmp.eq.s32.totalorder %s20, 0
      %p55 = por %p53, %p54
      %p56 = scmp.ne.s32.totalorder %s42, %s43
      %p57 = scmp.eq.s32.totalorder %s21, 1
      %p58 = por %p56, %p57
      %p60 = scmp.ne.s32.totalorder %s43, %s59
      %p61 = scmp.eq.s32.totalorder %s21, 0
      %p62 = por %p60, %p61
      %s64 = sadd.s32 %s63, 1
      %p67 = scmp.eq.s32.totalorder %s15, 1
      %p68 = scmp.ne.s32.totalorder %s63, %s65
      %p69 = scmp.eq.s32.totalorder %s15, 0
      %p70 = por %p68, %p69
      %p71 = scmp.ne.s32.totalorder %s63, %s65
      %p72 = scmp.eq.s32.totalorder %s20, 1
      %p73 = por %p71, %p72
      %p74 = scmp.ne.s32.totalorder %s65, %s66
      %p75 = scmp.eq.s32.totalorder %s20, 0
      %p76 = por %p74, %p75
      %p77 = scmp.ne.s32.totalorder %s65, %s66
      %p78 = scmp.eq.s32.totalorder %s21, 1
      %p79 = por %p77, %p78
      %p81 = scmp.ne.s32.totalorder %s66, %s80
      %p82 = scmp.eq.s32.totalorder %s21, 0
      %p83 = por %p81, %p82
      %s85 = sadd.s32 %s84, 1
      %p88 = scmp.eq.s32.totalorder %s15, 1
      %p89 = scmp.ne.s32.totalorder %s84, %s86
      %p90 = scmp.eq.s32.totalorder %s15, 0
      %p91 = por %p89, %p90
      %p92 = scmp.ne.s32.totalorder %s84, %s86
      %p93 = scmp.eq.s32.totalorder %s20, 1
      %p94 = por %p92, %p93
      %p95 = scmp.ne.s32.totalorder %s86, %s87
      %p96 = scmp.eq.s32.totalorder %s20, 0
      %p97 = por %p95, %p96
      %p98 = scmp.ne.s32.totalorder %s86, %s87
      %p99 = scmp.eq.s32.totalorder %s21, 1
      %p100 = por %p98, %p99
      %p102 = scmp.ne.s32.totalorder %s87, %s101
      %p103 = scmp.eq.s32.totalorder %s21, 0
      %p104 = por %p102, %p103
      %s105 = ssub.s32 %s22, %s34
      %s106 = ssub.s32 %s23, %s30
      %s107 = sor.u32 %s105, %s106
      %p108 = scmp.eq.s32.totalorder %s107, 0
      %s110 = sadd.s32 %s109, 1
      %s111 = scalar_select %p108, %s109, %s110
      %p114 = pneg %p108
      %p115 = scmp.eq.s32.totalorder %s15, 1
      %p116 = por %p114, %p115
      %p117 = scmp.ne.s32.totalorder %s109, %s112
      %p118 = scmp.eq.s32.totalorder %s15, 0
      %p119 = por %p117, %p118
      %p120 = scmp.ne.s32.totalorder %s109, %s112
      %p121 = scmp.eq.s32.totalorder %s20, 1
      %p122 = por %p120, %p121
      %p123 = scmp.ne.s32.totalorder %s112, %s113
      %p124 = scmp.eq.s32.totalorder %s20, 0
      %p125 = por %p123, %p124
      %p126 = scmp.ne.s32.totalorder %s112, %s113
      %p127 = scmp.eq.s32.totalorder %s21, 1
      %p128 = por %p126, %p127
      %p130 = scmp.ne.s32.totalorder %s113, %s129
      %p131 = scmp.eq.s32.totalorder %s21, 0
      %p132 = por %p130, %p131
      %p133 = scmp.le.s32.totalorder 1, %s15
      %p134 = scmp.lt.s32.totalorder %s15, 3
      %p135 = pnand %p133, %p134
      %p136 = pneg %p135
      // Predicated region
      $region9: #{tpu_custom_call.1} parent=5 // pred_check
        _
      $region10: #{tpu_custom_call.1} parent=5 // pred_check_branch
        %138 = sbr.rel (%p135) target = $region12
      $region11: #{tpu_custom_call.1} parent=5 // pred_region
        %s139 = ssub.s32 %s15, 1
        // Predicated region
        $region13: #{tpu_custom_call.1} parent=11 // pred_check
          %p140 = pneg %p76
        $region14: #{tpu_custom_call.1} parent=11 // pred_check_branch
          %142 = sbr.rel (%p140) target = $region16
        $region15: #{tpu_custom_call.1} parent=11 // pred_region
          _
        $region16: #{tpu_custom_call.1} parent=11 // pred_fallthru
          _
        // Predicated region
        $region17: #{tpu_custom_call.1} parent=11 // pred_check
          %p143 = pneg %p97
        $region18: #{tpu_custom_call.1} parent=11 // pred_check_branch
          %145 = sbr.rel (%p143) target = $region20
        $region19: #{tpu_custom_call.1} parent=11 // pred_region
          _
        $region20: #{tpu_custom_call.1} parent=11 // pred_fallthru
          _
      $region12: #{tpu_custom_call.1} parent=5 // pred_fallthru
        _
      %p146 = scmp.lt.s32.totalorder %s15, 2
      // Predicated region
      $region21: #{tpu_custom_call.1} parent=5 // pred_check
        %p147 = pneg %p146
      $region22: #{tpu_custom_call.1} parent=5 // pred_check_branch
        %149 = sbr.rel (%p147) target = $region24
      $region23: #{tpu_custom_call.1} parent=5 // pred_region
        // Predicated region
        $region25: #{tpu_custom_call.1} parent=23 // pred_check
          %p150 = pneg %p49
        $region26: #{tpu_custom_call.1} parent=23 // pred_check_branch
          %152 = sbr.rel (%p150) target = $region28
        $region27: #{tpu_custom_call.1} parent=23 // pred_region
          %s153 = sand.u32 %s39, 1
          %s154 = scalar_lea.sflag [#allocation3], %s153
          %s155 = sand.u32 %s39, 1
          %s156 = smul.addr %s155, 128
          %s157 = scalar_lea.vmem [#allocation2], %s156
          %s158 = smul.u32 2, %s23
          %s160 = ssub.s32 2048, 2048
          %161 = vsyncadd %s154, %s160
          %s162 = smul.addr %s22, 16
          %s163 = sadd.s32 %s158, %s162
          %s164 = smul.addr %s163, 128
          %s165 = scalar_lea.hbm %s0, %s164
          %s166 = sshll.u32 %s157, 4
          %s167 = int_to_ptr.vmem [resolvable:$true] %s166
          %172 = dma.hbm_to_vmem [thread:$0]  %s165, 2048, %s167, %s154, 256, 256, 16
        $region28: #{tpu_custom_call.1} parent=23 // pred_fallthru
          _
      $region24: #{tpu_custom_call.1} parent=5 // pred_fallthru
        _
      %p173 = scmp.le.s32.totalorder 1, %s15
      %p174 = scmp.lt.s32.totalorder %s15, 3
      %p175 = pnand %p173, %p174
      %p176 = pneg %p175
      // Predicated region
      $region29: #{tpu_custom_call.1} parent=5 // pred_check
        _
      $region30: #{tpu_custom_call.1} parent=5 // pred_check_branch
        %178 = sbr.rel (%p175) target = $region32
      $region31: #{tpu_custom_call.1} parent=5 // pred_region
        %s179 = ssub.s32 %s15, 1
        %s180 = sand.u32 %s42, 1
        %s181 = scalar_lea.sflag [#allocation3], %s180
        %s182 = sand.u32 %s42, 1
        %s183 = smul.addr %s182, 128
        %s184 = scalar_lea.vmem [#allocation2], %s183
        // Predicated region
        $region33: #{tpu_custom_call.1} parent=31 // pred_check
          %p185 = pneg %p55
        $region34: #{tpu_custom_call.1} parent=31 // pred_check_branch
          %187 = sbr.rel (%p185) target = $region36
        $region35: #{tpu_custom_call.1} parent=31 // pred_region
          %188 = dma.done %s181, 2048
        $region36: #{tpu_custom_call.1} parent=31 // pred_fallthru
          _
        %s189 = sand.u32 %s42, 1
        %s190 = scalar_lea.sflag [#allocation3], %s189
        %s191 = sand.u32 %s42, 1
        %s192 = smul.addr %s191, 128
        %s193 = scalar_lea.vmem [#allocation2], %s192
        %p194 = pneg %p55
        %p195 = pneg %p52
        %p196 = pneg %p76
        %p197 = pneg %p73
        %p198 = pneg %p97
        %p199 = pneg %p94
        %p200 = pneg %p125
        %p201 = pneg %p122
        %s202 = sand.u32 %s112, 1
        %s203 = scalar_lea.sflag [#allocation4], %s202
        %s204 = sand.u32 %s112, 1
        %s205 = smul.addr %s204, 256
        %s206 = scalar_lea.vmem [#allocation5], %s205
        %s207 = smul.u32 2, %s25
        %s208 = smul.u32 2, %s25
        %v210 = vld [vmem:[%s184] sm:$0xff]
        %v211 = vld [vmem:[%s184 + $0x8] sm:$0xff]
        %v212 = vld [vmem:[%s184 + $0x10] sm:$0xff]
        %v213 = vld [vmem:[%s184 + $0x18] sm:$0xff]
        %v214 = vld [vmem:[%s184 + $0x20] sm:$0xff]
        %v215 = vld [vmem:[%s184 + $0x28] sm:$0xff]
        %v216 = vld [vmem:[%s184 + $0x30] sm:$0xff]
        %v217 = vld [vmem:[%s184 + $0x38] sm:$0xff]
        %v218 = vld [vmem:[%s184 + $0x40] sm:$0xff]
        %v219 = vld [vmem:[%s184 + $0x48] sm:$0xff]
        %v220 = vld [vmem:[%s184 + $0x50] sm:$0xff]
        %v221 = vld [vmem:[%s184 + $0x58] sm:$0xff]
        %v222 = vld [vmem:[%s184 + $0x60] sm:$0xff]
        %v223 = vld [vmem:[%s184 + $0x68] sm:$0xff]
        %v224 = vld [vmem:[%s184 + $0x70] sm:$0xff]
        %v225 = vld [vmem:[%s184 + $0x78] sm:$0xff]
        %v226 = vpack.c.bf16 %v212, %v210
        %v227 = vpack.c.bf16 %v213, %v211
        %v228 = vpack.c.bf16 %v216, %v214
        %v229 = vpack.c.bf16 %v217, %v215
        %v230 = vpack.c.bf16 %v220, %v218
        %v231 = vpack.c.bf16 %v221, %v219
        %v232 = vpack.c.bf16 %v224, %v222
        %v233 = vpack.c.bf16 %v225, %v223
        %v234 = vld [vmem:[%s1] sm:$0xf]
        %v235 = vld [vmem:[%s1 + $0x4] sm:$0xf]
        %v236 = vld [vmem:[%s1 + $0x8] sm:$0xf]
        %v237 = vld [vmem:[%s1 + $0xc] sm:$0xf]
        %v238 = vld [vmem:[%s1 + $0x10] sm:$0xf]
        %v239 = vld [vmem:[%s1 + $0x14] sm:$0xf]
        %v240 = vld [vmem:[%s1 + $0x18] sm:$0xf]
        %v241 = vld [vmem:[%s1 + $0x1c] sm:$0xf]
        %v242 = vld [vmem:[%s1 + $0x20] sm:$0xf]
        %v243 = vld [vmem:[%s1 + $0x24] sm:$0xf]
        %v244 = vld [vmem:[%s1 + $0x28] sm:$0xf]
        %v245 = vld [vmem:[%s1 + $0x2c] sm:$0xf]
        %v246 = vld [vmem:[%s1 + $0x30] sm:$0xf]
        %v247 = vld [vmem:[%s1 + $0x34] sm:$0xf]
        %v248 = vld [vmem:[%s1 + $0x38] sm:$0xf]
        %v249 = vld [vmem:[%s1 + $0x3c] sm:$0xf]
        %v250 = vld [vmem:[%s2] sm:$0xff]
        %v251 = vld [vmem:[%s2 + $0x8] sm:$0xff]
        %v252 = vld [vmem:[%s2 + $0x10] sm:$0xff]
        %v253 = vld [vmem:[%s2 + $0x18] sm:$0xff]
        %v254 = vld [vmem:[%s2 + $0x20] sm:$0xff]
        %v255 = vld [vmem:[%s2 + $0x28] sm:$0xff]
        %v256 = vld [vmem:[%s2 + $0x30] sm:$0xff]
        %v257 = vld [vmem:[%s2 + $0x38] sm:$0xff]
        %v258 = vld [vmem:[%s2 + $0x40] sm:$0xff]
        %v259 = vld [vmem:[%s2 + $0x48] sm:$0xff]
        %v260 = vld [vmem:[%s2 + $0x50] sm:$0xff]
        %v261 = vld [vmem:[%s2 + $0x58] sm:$0xff]
        %v262 = vld [vmem:[%s2 + $0x60] sm:$0xff]
        %v263 = vld [vmem:[%s2 + $0x68] sm:$0xff]
        %v264 = vld [vmem:[%s2 + $0x70] sm:$0xff]
        %v265 = vld [vmem:[%s2 + $0x78] sm:$0xff]
        %267 = vset.pattern.permute.xlu0 0
        %268 = vperm.xlu0 %267, %v250
        %v269 = vpop.permute.xlu0 %268
        %272 = vset.pattern.permute.xlu0 0
        %273 = vperm.xlu0 %272, %v251
        %v274 = vpop.permute.xlu0 %273
        %277 = vset.pattern.permute.xlu0 0
        %278 = vperm.xlu0 %277, %v252
        %v279 = vpop.permute.xlu0 %278
        %282 = vset.pattern.permute.xlu0 0
        %283 = vperm.xlu0 %282, %v253
        %v284 = vpop.permute.xlu0 %283
        %287 = vset.pattern.permute.xlu0 0
        %288 = vperm.xlu0 %287, %v254
        %v289 = vpop.permute.xlu0 %288
        %292 = vset.pattern.permute.xlu0 0
        %293 = vperm.xlu0 %292, %v255
        %v294 = vpop.permute.xlu0 %293
        %297 = vset.pattern.permute.xlu0 0
        %298 = vperm.xlu0 %297, %v256
        %v299 = vpop.permute.xlu0 %298
        %302 = vset.pattern.permute.xlu0 0
        %303 = vperm.xlu0 %302, %v257
        %v304 = vpop.permute.xlu0 %303
        %307 = vset.pattern.permute.xlu0 0
        %308 = vperm.xlu0 %307, %v258
        %v309 = vpop.permute.xlu0 %308
        %312 = vset.pattern.permute.xlu0 0
        %313 = vperm.xlu0 %312, %v259
        %v314 = vpop.permute.xlu0 %313
        %317 = vset.pattern.permute.xlu0 0
        %318 = vperm.xlu0 %317, %v260
        %v319 = vpop.permute.xlu0 %318
        %322 = vset.pattern.permute.xlu0 0
        %323 = vperm.xlu0 %322, %v261
        %v324 = vpop.permute.xlu0 %323
        %327 = vset.pattern.permute.xlu0 0
        %328 = vperm.xlu0 %327, %v262
        %v329 = vpop.permute.xlu0 %328
        %332 = vset.pattern.permute.xlu0 0
        %333 = vperm.xlu0 %332, %v263
        %v334 = vpop.permute.xlu0 %333
        %337 = vset.pattern.permute.xlu0 0
        %338 = vperm.xlu0 %337, %v264
        %v339 = vpop.permute.xlu0 %338
        %342 = vset.pattern.permute.xlu0 0
        %343 = vperm.xlu0 %342, %v265
        %v344 = vpop.permute.xlu0 %343
        %v362 = vunpack.c.l.b16 %v234
        %v363 = vunpack.c.l.b16 %v235
        %v364 = vunpack.c.l.b16 %v236
        %v365 = vunpack.c.l.b16 %v237
        %v366 = vunpack.c.l.b16 %v238
        %v367 = vunpack.c.l.b16 %v239
        %v368 = vunpack.c.l.b16 %v240
        %v369 = vunpack.c.l.b16 %v241
        %v370 = vunpack.c.l.b16 %v242
        %v371 = vunpack.c.l.b16 %v243
        %v372 = vunpack.c.l.b16 %v244
        %v373 = vunpack.c.l.b16 %v245
        %v374 = vunpack.c.l.b16 %v246
        %v375 = vunpack.c.l.b16 %v247
        %v376 = vunpack.c.l.b16 %v248
        %v377 = vunpack.c.l.b16 %v249
        %v378 = vpack.c.b16 %v363, %v362
        %v379 = vpack.c.b16 %v365, %v364
        %v380 = vpack.c.b16 %v367, %v366
        %v381 = vpack.c.b16 %v369, %v368
        %v382 = vpack.c.b16 %v371, %v370
        %v383 = vpack.c.b16 %v373, %v372
        %v384 = vpack.c.b16 %v375, %v374
        %v385 = vpack.c.b16 %v377, %v376
        %vm386 = vcmask 523264
        %v388 = vsel %vm386, %v378, 0
        %v391 = vsel %vm386, %v379, 0
        %v394 = vsel %vm386, %v380, 0
        %v397 = vsel %vm386, %v381, 0
        %v400 = vsel %vm386, %v382, 0
        %v403 = vsel %vm386, %v383, 0
        %v406 = vsel %vm386, %v384, 0
        %v409 = vsel %vm386, %v385, 0
        %411 = vmatprep.subr.bf16.mxu0 %v227
        %412 = vmatpush1.bf16.msra.mxu0 %v226
        %413 = vmatprep.subr.bf16.mxu0 %v229
        %414 = vmatpush1.bf16.msra.mxu0 %v228
        %415 = vmatprep.subr.bf16.mxu0 %v231
        %416 = vmatpush1.bf16.msra.mxu0 %v230
        %417 = vmatprep.subr.bf16.mxu0 %v233
        %418 = vmatpush1.bf16.msra.mxu0 %v232
        %419 = vmatprep.subr.bf16.mxu0 0
        %420 = vmatpush1.bf16.msra.mxu0 0
        %421 = vmatprep.subr.bf16.mxu0 0
        %422 = vmatpush1.bf16.msra.mxu0 0
        %423 = vmatprep.subr.bf16.mxu0 0
        %424 = vmatpush1.bf16.msra.mxu0 0
        %425 = vmatprep.subr.bf16.mxu0 0
        %426 = vmatpush1.bf16.msra.mxu0 0
        %427 = vmatprep.subr.bf16.mxu0 0
        %428 = vmatpush1.bf16.msra.mxu0 0
        %429 = vmatprep.subr.bf16.mxu0 0
        %430 = vmatpush1.bf16.msra.mxu0 0
        %431 = vmatprep.subr.bf16.mxu0 0
        %432 = vmatpush1.bf16.msra.mxu0 0
        %433 = vmatprep.subr.bf16.mxu0 0
        %434 = vmatpush1.bf16.msra.mxu0 0
        %435 = vmatprep.subr.bf16.mxu0 0
        %436 = vmatpush1.bf16.msra.mxu0 0
        %437 = vmatprep.subr.bf16.mxu0 0
        %438 = vmatpush1.bf16.msra.mxu0 0
        %439 = vmatprep.subr.bf16.mxu0 0
        %440 = vmatpush1.bf16.msra.mxu0 0
        %441 = vmatprep.subr.bf16.mxu0 0
        %442 = vmatpush1.bf16.msra.mxu0 0
        %443 = vmatprep.mubr.bf16.mxu0 0
        %444 = vmatmul.mubr.bf16.gmra.mrb[0].mxu0 %v388
        %v445 = vpop.f32.mrb[0].mxu0
        %v446 = vadd.f32 %v269, %v445
        %v447 = vpop.f32.mrb[0].mxu0
        %v448 = vadd.f32 %v269, %v447
        %v449 = vpop.f32.mrb[0].mxu0
        %v450 = vadd.f32 %v274, %v449
        %v451 = vpop.f32.mrb[0].mxu0
        %v452 = vadd.f32 %v274, %v451
        %453 = vmatprep.mubr.bf16.mxu0 0
        %454 = vmatmul.mubr.bf16.gmra.mrb[0].mxu0 %v391
        %v455 = vpop.f32.mrb[0].mxu0
        %v456 = vadd.f32 %v279, %v455
        %v457 = vpop.f32.mrb[0].mxu0
        %v458 = vadd.f32 %v279, %v457
        %v459 = vpop.f32.mrb[0].mxu0
        %v460 = vadd.f32 %v284, %v459
        %v461 = vpop.f32.mrb[0].mxu0
        %v462 = vadd.f32 %v284, %v461
        %463 = vmatprep.mubr.bf16.mxu0 0
        %464 = vmatmul.mubr.bf16.gmra.mrb[0].mxu0 %v394
        %v465 = vpop.f32.mrb[0].mxu0
        %v466 = vadd.f32 %v289, %v465
        %v467 = vpop.f32.mrb[0].mxu0
        %v468 = vadd.f32 %v289, %v467
        %v469 = vpop.f32.mrb[0].mxu0
        %v470 = vadd.f32 %v294, %v469
        %v471 = vpop.f32.mrb[0].mxu0
        %v472 = vadd.f32 %v294, %v471
        %473 = vmatprep.mubr.bf16.mxu0 0
        %474 = vmatmul.mubr.bf16.gmra.mrb[0].mxu0 %v397
        %v475 = vpop.f32.mrb[0].mxu0
        %v476 = vadd.f32 %v299, %v475
        %v477 = vpop.f32.mrb[0].mxu0
        %v478 = vadd.f32 %v299, %v477
        %v479 = vpop.f32.mrb[0].mxu0
        %v480 = vadd.f32 %v304, %v479
        %v481 = vpop.f32.mrb[0].mxu0
        %v482 = vadd.f32 %v304, %v481
        %483 = vmatprep.mubr.bf16.mxu0 0
        %484 = vmatmul.mubr.bf16.gmra.mrb[0].mxu0 %v400
        %v485 = vpop.f32.mrb[0].mxu0
        %v486 = vadd.f32 %v309, %v485
        %v487 = vpop.f32.mrb[0].mxu0
        %v488 = vadd.f32 %v309, %v487
        %v489 = vpop.f32.mrb[0].mxu0
        %v490 = vadd.f32 %v314, %v489
        %v491 = vpop.f32.mrb[0].mxu0
        %v492 = vadd.f32 %v314, %v491
        %493 = vmatprep.mubr.bf16.mxu0 0
        %494 = vmatmul.mubr.bf16.gmra.mrb[0].mxu0 %v403
        %v495 = vpop.f32.mrb[0].mxu0
        %v496 = vadd.f32 %v319, %v495
        %v497 = vpop.f32.mrb[0].mxu0
        %v498 = vadd.f32 %v319, %v497
        %v499 = vpop.f32.mrb[0].mxu0
        %v500 = vadd.f32 %v324, %v499
        %v501 = vpop.f32.mrb[0].mxu0
        %v502 = vadd.f32 %v324, %v501
        %503 = vmatprep.mubr.bf16.mxu0 0
        %504 = vmatmul.mubr.bf16.gmra.mrb[0].mxu0 %v406
        %v505 = vpop.f32.mrb[0].mxu0
        %v506 = vadd.f32 %v329, %v505
        %v507 = vpop.f32.mrb[0].mxu0
        %v508 = vadd.f32 %v329, %v507
        %v509 = vpop.f32.mrb[0].mxu0
        %v510 = vadd.f32 %v334, %v509
        %v511 = vpop.f32.mrb[0].mxu0
        %v512 = vadd.f32 %v334, %v511
        %513 = vmatprep.mubr.bf16.mxu0 0
        %514 = vmatmul.mubr.bf16.gmra.mrb[0].mxu0 %v409
        %v515 = vpop.f32.mrb[0].mxu0
        %v516 = vadd.f32 %v339, %v515
        %v517 = vpop.f32.mrb[0].mxu0
        %v518 = vadd.f32 %v339, %v517
        %v519 = vpop.f32.mrb[0].mxu0
        %v520 = vadd.f32 %v344, %v519
        %v521 = vpop.f32.mrb[0].mxu0
        %v522 = vadd.f32 %v344, %v521
        %523 = vdwg.mxu0
        %524 = vst [vmem:[%s206] sm:$0xff] %v446
        %525 = vst [vmem:[%s206 + $0x8] sm:$0xff] %v448
        %526 = vst [vmem:[%s206 + $0x10] sm:$0xff] %v450
        %527 = vst [vmem:[%s206 + $0x18] sm:$0xff] %v452
        %528 = vst [vmem:[%s206 + $0x20] sm:$0xff] %v456
        %529 = vst [vmem:[%s206 + $0x28] sm:$0xff] %v458
        %530 = vst [vmem:[%s206 + $0x30] sm:$0xff] %v460
        %531 = vst [vmem:[%s206 + $0x38] sm:$0xff] %v462
        %532 = vst [vmem:[%s206 + $0x40] sm:$0xff] %v466
        %533 = vst [vmem:[%s206 + $0x48] sm:$0xff] %v468
        %534 = vst [vmem:[%s206 + $0x50] sm:$0xff] %v470
        %535 = vst [vmem:[%s206 + $0x58] sm:$0xff] %v472
        %536 = vst [vmem:[%s206 + $0x60] sm:$0xff] %v476
        %537 = vst [vmem:[%s206 + $0x68] sm:$0xff] %v478
        %538 = vst [vmem:[%s206 + $0x70] sm:$0xff] %v480
        %539 = vst [vmem:[%s206 + $0x78] sm:$0xff] %v482
        %540 = vst [vmem:[%s206 + $0x80] sm:$0xff] %v486
        %541 = vst [vmem:[%s206 + $0x88] sm:$0xff] %v488
        %542 = vst [vmem:[%s206 + $0x90] sm:$0xff] %v490
        %543 = vst [vmem:[%s206 + $0x98] sm:$0xff] %v492
        %544 = vst [vmem:[%s206 + $0xa0] sm:$0xff] %v496
        %545 = vst [vmem:[%s206 + $0xa8] sm:$0xff] %v498
        %546 = vst [vmem:[%s206 + $0xb0] sm:$0xff] %v500
        %547 = vst [vmem:[%s206 + $0xb8] sm:$0xff] %v502
        %548 = vst [vmem:[%s206 + $0xc0] sm:$0xff] %v506
        %549 = vst [vmem:[%s206 + $0xc8] sm:$0xff] %v508
        %550 = vst [vmem:[%s206 + $0xd0] sm:$0xff] %v510
        %551 = vst [vmem:[%s206 + $0xd8] sm:$0xff] %v512
        %552 = vst [vmem:[%s206 + $0xe0] sm:$0xff] %v516
        %553 = vst [vmem:[%s206 + $0xe8] sm:$0xff] %v518
        %554 = vst [vmem:[%s206 + $0xf0] sm:$0xff] %v520
        %555 = vst [vmem:[%s206 + $0xf8] sm:$0xff] %v522
        %s556 = sand.u32 %s112, 1
        %s557 = scalar_lea.sflag [#allocation4], %s556
        %s558 = sand.u32 %s112, 1
        %s559 = smul.addr %s558, 256
        %s560 = scalar_lea.vmem [#allocation5], %s559
        // Predicated region
        $region37: #{tpu_custom_call.1} parent=31 // pred_check
          %p561 = pneg %p122
        $region38: #{tpu_custom_call.1} parent=31 // pred_check_branch
          %563 = sbr.rel (%p561) target = $region40
        $region39: #{tpu_custom_call.1} parent=31 // pred_region
          %s564 = smul.u32 2, %s25
          %s566 = ssub.s32 4096, 4096
          %567 = vsyncadd %s557, %s566
          %s568 = smul.addr %s24, 32
          %s569 = sadd.s32 %s564, %s568
          %s570 = smul.addr %s569, 128
          %s571 = scalar_lea.hbm %s3, %s570
          %s572 = sshll.u32 %s560, 4
          %s573 = int_to_ptr.vmem [resolvable:$true] %s572
          %578 = dma.vmem_to_hbm [thread:$0]  %s573, 4096, %s571, %s557, 256, 256, 16
        $region40: #{tpu_custom_call.1} parent=31 // pred_fallthru
          _
      $region32: #{tpu_custom_call.1} parent=5 // pred_fallthru
        _
      %p579 = scmp.le.s32.totalorder 2, %s15
      // Predicated region
      $region41: #{tpu_custom_call.1} parent=5 // pred_check
        %p580 = pneg %p579
      $region42: #{tpu_custom_call.1} parent=5 // pred_check_branch
        %582 = sbr.rel (%p580) target = $region44
      $region43: #{tpu_custom_call.1} parent=5 // pred_region
        %s583 = ssub.s32 %s15, 2
        // Predicated region
        $region45: #{tpu_custom_call.1} parent=43 // pred_check
          %p584 = pneg %p128
        $region46: #{tpu_custom_call.1} parent=43 // pred_check_branch
          %586 = sbr.rel (%p584) target = $region48
        $region47: #{tpu_custom_call.1} parent=43 // pred_region
          %s587 = sand.u32 %s113, 1
          %s588 = scalar_lea.sflag [#allocation4], %s587
          %s589 = sand.u32 %s113, 1
          %s590 = smul.addr %s589, 256
          %s591 = scalar_lea.vmem [#allocation5], %s590
          %592 = dma.done %s588, 4096
        $region48: #{tpu_custom_call.1} parent=43 // pred_fallthru
          _
      $region44: #{tpu_custom_call.1} parent=5 // pred_fallthru
        _
    $region6: #{tpu_custom_call.1} parent=1 // loop_footer
      %s19 = sadd.s32 1, %s15
    $region7: #{tpu_custom_call.1} parent=1 // loop_footer_branch
      %14 = sbr.rel target = $region3
    $region8: #{tpu_custom_call.1} parent=1 // loop_exit
      _
    %593 = vsyncpa [#allocation3], 1
    %s594 = scalar_lea.sflag [#allocation3], 1
    %595 = vsyncpa %s594, 1
    %596 = vsyncpa [#allocation4], 1
    %s597 = scalar_lea.sflag [#allocation4], 1
    %598 = vsyncpa %s597, 1

</llo_original>
